<compile_context>
chip_gen: v5e
topology: v5e:2x2
jax: 0.10.0
libtpu: 0.0.40
codegen_flags: <defaults>
</compile_context>

<pallas_src>
import functools

import jax
import jax.numpy as jnp
from jax.experimental import pallas as pl
from jax.experimental.pallas import tpu as pltpu


def _gaussian_fused_kernel(h_ref, w_ref, b_ref, out_ref, *, o_size):
    """One fused head: z = h @ [W_mu | W_sig] + [b_mu | b_sig].

    Columns [0, O)   -> mu    (identity)
    Columns [O, 2*O) -> sigma (stable softplus + 1e-6)
    """
    h = h_ref[...]                                           # (TB, H)
    z = jnp.dot(h, w_ref[...],
                preferred_element_type=jnp.float32)          # (TB, 2O) f32
    z = z + b_ref[...].astype(jnp.float32)                   # bias broadcast

    # Numerically stable softplus (no overflow for large z) + epsilon.
    sp = jnp.maximum(z, 0.0) + jnp.log1p(jnp.exp(-jnp.abs(z))) + 1e-6

    # Lane mask: sigma columns get softplus, mu columns pass through.
    col = jax.lax.broadcasted_iota(jnp.int32, z.shape, dimension=1)
    out = jnp.where(col >= o_size, sp, z)

    out_ref[...] = out.astype(out_ref.dtype)


def _round_up(x, m):
    return (x + m - 1) // m * m


def gaussian_forward(h, w_mu, b_mu, w_sig, b_sig, *, block_b=8192):
    """h: (B, H); w_*: (H, O) (pre-transposed); b_*: (O,).

    Returns (mu, sigma) in float32, each (B, O) — with a leading dim of size 1
    squeezed away, mimicking torch .squeeze(0) on the 2-D result.
    """
    B, H = h.shape
    O = w_mu.shape[1]
    F = 2 * O

    # Fuse the two heads: one (H, 2O) weight, one (1, 2O) bias.
    w_f = jnp.concatenate([w_mu, w_sig], axis=1)          # (H, 2O)
    b_f = jnp.concatenate([b_mu, b_sig]).reshape(1, F)    # (1, 2O)

    # --- Batch tile selection ------------------------------------------------
    # * multiple of 8 (sublane granularity),
    # * large enough to amortize per-grid-step overhead (block_b default 8192),
    # * small enough to keep >= 4 grid steps when B allows (v7x dual-TC sharding),
    # * capped so the double-buffered h + out blocks stay well inside the
    #   scoped-VMEM default on every generation.
    itemsize = jnp.dtype(h.dtype).itemsize
    row_bytes = H * itemsize + F * 4                       # h row + f32 out row
    vmem_budget = 16 * 1024 * 1024                         # per double-buffer pair
    tb_vmem = max(8, (vmem_budget // (2 * row_bytes)) // 8 * 8)
    tb_split = max(8, _round_up(pl.cdiv(B, 4), 8))         # aim for >= 4 steps
    tb = min(block_b, tb_vmem, tb_split)
    if tb >= B:
        tb = B                                             # single full-dim block

    grid = (pl.cdiv(B, tb),)                               # ragged last block OK

    kernel = functools.partial(_gaussian_fused_kernel, o_size=O)

    out = pl.pallas_call(
        kernel,
        out_shape=jax.ShapeDtypeStruct((B, F), jnp.float32),
        grid=grid,
        in_specs=[
            pl.BlockSpec((tb, H), lambda i: (i, 0)),   # h: blocked on batch
            pl.BlockSpec((H, F), lambda i: (0, 0)),    # fused weight: resident
            pl.BlockSpec((1, F), lambda i: (0, 0)),    # fused bias: resident
        ],
        out_specs=pl.BlockSpec((tb, F), lambda i: (i, 0)),
        compiler_params=pltpu.CompilerParams(
            dimension_semantics=("parallel",)),
    )(h, w_f, b_f)

    mu = out[:, :O]
    sigma = out[:, O:]

    # torch .squeeze(0): only removes the leading dim when it equals 1.
    if B == 1:
        mu = jnp.squeeze(mu, axis=0)
        sigma = jnp.squeeze(sigma, axis=0)
    return mu, sigma


if __name__ == "__main__":
    hidden_size = 32
    output_size = 16
    batch = 20   # not a multiple of the batch tile -> exercises the masked ragged block

    key = jax.random.PRNGKey(0)
    k_h, k_wm, k_bm, k_ws, k_bs = jax.random.split(key, 5)

    # Deterministic synthetic parameters (PyTorch nn.Linear-like scale 1/sqrt(H)).
    bound = 1.0 / jnp.sqrt(hidden_size)
    h = jax.random.normal(k_h, (batch, hidden_size), dtype=jnp.float32)
    # Stored pre-transposed: (hidden, output).
    w_mu = jax.random.uniform(k_wm, (hidden_size, output_size),
                              minval=-bound, maxval=bound, dtype=jnp.float32)
    b_mu = jax.random.uniform(k_bm, (output_size,),
                              minval=-bound, maxval=bound, dtype=jnp.float32)
    w_sig = jax.random.uniform(k_ws, (hidden_size, output_size),
                               minval=-bound, maxval=bound, dtype=jnp.float32)
    b_sig = jax.random.uniform(k_bs, (output_size,),
                               minval=-bound, maxval=bound, dtype=jnp.float32)

    mu, sigma = jax.jit(gaussian_forward)(h, w_mu, b_mu, w_sig, b_sig)
    jax.block_until_ready((mu, sigma))

    # Reference check in plain JAX.
    mu_ref = h @ w_mu + b_mu
    sigma_ref = jax.nn.softplus(h @ w_sig + b_sig) + 1e-6
    assert mu.shape == (batch, output_size)
    assert sigma.shape == (batch, output_size)
    assert jnp.allclose(mu, mu_ref, atol=1e-5, rtol=1e-5)
    assert jnp.allclose(sigma, sigma_ref, atol=1e-5, rtol=1e-5)
    assert bool(jnp.all(sigma > 0))

    print("KERNEL_OK")
</pallas_src>

<mosaic_0001>
module attributes {stable_mosaic.version = 11 : i64} {
  func.func @_gaussian_fused_kernel(%arg0: i32, %arg1: memref<8x32xf32, #tpu.memory_space<vmem>>, %arg2: memref<32x32xf32, #tpu.memory_space<vmem>>, %arg3: memref<1x32xf32, #tpu.memory_space<vmem>>, %arg4: memref<8x32xf32, #tpu.memory_space<vmem>>) attributes {dimension_semantics = [#tpu.dimension_semantics<parallel>], iteration_bounds = array<i64: 3>, scalar_prefetch = 0 : i64, scratch_operands = 0 : i64, tpu.core_type = #tpu.core_type<tc>, window_params = [{transform_indices = @transform_0, window_bounds = array<i64: 8, 32>}, {pipeline_mode = #tpu.pipeline_mode<synchronous>, transform_indices = @transform_1, window_bounds = array<i64: 32, 32>}, {pipeline_mode = #tpu.pipeline_mode<synchronous>, transform_indices = @transform_2, window_bounds = array<i64: 1, 32>}, {transform_indices = @transform_3, window_bounds = array<i64: 8, 32>}]} {
    %c0 = arith.constant 0 : index
    %c0_0 = arith.constant 0 : index
    %0 = vector.load %arg1[%c0, %c0_0] : memref<8x32xf32, #tpu.memory_space<vmem>>, vector<8x32xf32>
    %c0_1 = arith.constant 0 : index
    %c0_2 = arith.constant 0 : index
    %1 = vector.load %arg2[%c0_1, %c0_2] : memref<32x32xf32, #tpu.memory_space<vmem>>, vector<32x32xf32>
    %cst = arith.constant dense<0.000000e+00> : vector<8x32xf32>
    %2 = tpu.matmul %0, %1, %cst {dimension_numbers = #tpu.dot_dimension_numbers<[1], [0], [0], [1], [0, 0, 1, 1], [], []>} : vector<8x32xf32>, vector<32x32xf32>, vector<8x32xf32> -> vector<8x32xf32>
    %c0_3 = arith.constant 0 : index
    %c0_4 = arith.constant 0 : index
    %3 = vector.load %arg3[%c0_3, %c0_4] : memref<1x32xf32, #tpu.memory_space<vmem>>, vector<1x32xf32>
    %4 = vector.broadcast %3 : vector<1x32xf32> to vector<8x32xf32>
    %5 = arith.addf %2, %4 : vector<8x32xf32>
    %cst_5 = arith.constant 0.000000e+00 : f32
    %6 = vector.broadcast %cst_5 : f32 to vector<8x32xf32>
    %7 = arith.maximumf %5, %6 : vector<8x32xf32>
    %8 = math.absf %5 : vector<8x32xf32>
    %cst_6 = arith.constant 0.000000e+00 : f32
    %9 = vector.broadcast %cst_6 : f32 to vector<8x32xf32>
    %10 = arith.subf %9, %8 : vector<8x32xf32>
    %11 = math.exp %10 : vector<8x32xf32>
    %12 = math.log1p %11 : vector<8x32xf32>
    %13 = arith.addf %7, %12 : vector<8x32xf32>
    %cst_7 = arith.constant 9.99999997E-7 : f32
    %14 = vector.broadcast %cst_7 : f32 to vector<8x32xf32>
    %15 = arith.addf %13, %14 : vector<8x32xf32>
    %16 = tpu.iota {dimensions = array<i32: 1>} : vector<8x32xi32>
    %c16_i32 = arith.constant 16 : i32
    %17 = vector.broadcast %c16_i32 : i32 to vector<8x32xi32>
    %18 = arith.cmpi sge, %16, %17 : vector<8x32xi32>
    %19 = arith.select %18, %15, %5 : vector<8x32xi1>, vector<8x32xf32>
    %c0_8 = arith.constant 0 : index
    %c0_9 = arith.constant 0 : index
    %20 = vector.load %arg4[%c0_8, %c0_9] : memref<8x32xf32, #tpu.memory_space<vmem>>, vector<8x32xf32>
    tpu.vector_store %arg4[%c0_8, %c0_9], %19 {strides = array<i32>} : memref<8x32xf32, #tpu.memory_space<vmem>>, vector<8x32xf32>,
    return
  }
  func.func @transform_0(%arg0: i32) -> (i32, i32) {
    %c0_i32 = arith.constant 0 : i32
    %c0_i32_0 = arith.constant 0 : i32
    return %arg0, %c0_i32 : i32, i32
  }
  func.func @transform_1(%arg0: i32) -> (i32, i32) {
    %c0_i32 = arith.constant 0 : i32
    %c0_i32_0 = arith.constant 0 : i32
    %c0_i32_1 = arith.constant 0 : i32
    return %c0_i32, %c0_i32_0 : i32, i32
  }
  func.func @transform_2(%arg0: i32) -> (i32, i32) {
    %c0_i32 = arith.constant 0 : i32
    %c0_i32_0 = arith.constant 0 : i32
    %c0_i32_1 = arith.constant 0 : i32
    return %c0_i32, %c0_i32_0 : i32, i32
  }
  func.func @transform_3(%arg0: i32) -> (i32, i32) {
    %c0_i32 = arith.constant 0 : i32
    %c0_i32_0 = arith.constant 0 : i32
    return %arg0, %c0_i32 : i32, i32
  }
}

</mosaic_0001>

<llo_original>
// kernel: gaussian_forward.1
$region0: #{gaussian_forward.1}
  #allocation0 [shape = 'u32[]', space=smem, size = 0x4, offset = 0x4, fixed_abs, tag = 'smem constant byte address 0x4 - core index']
  #allocation1 [shape = 'u32[72,128]{1,0:T(1,128)}', space=vmem, size = 0x9000, scoped, tag = 'internal scratch']
  %s0 = inlined_call_operand.vmem [shape: f32[20,32], index: 0, kind: input, shape index: {}]
  %s1 = inlined_call_operand.vmem [shape: f32[32,32], index: 1, kind: input, shape index: {}]
  %s2 = inlined_call_operand.vmem [shape: f32[1,32], index: 2, kind: input, shape index: {}]
  %s3 = inlined_call_operand.vmem [shape: f32[20,32], index: 3, kind: output, shape index: {}]
  %s4 = sld [smem:[#allocation0]]
  $region45: #{gaussian_forward.1} parent=0
    _
  %s6 = ssub.s32 1, %s4
  %s7 = scalar_select 0, %s6, %s4
  loop: start=0, step=1, limit=5
  $region2: #{gaussian_forward.1} parent=0 // loop_pre_header
    _
  $region3: #{gaussian_forward.1} parent=0 // loop_header
    %s9 = sphi 0, %s13
    %p10 = scmp.ge.s32.totalorder %s9, 5
    %s19 = sphi 0, %s21
    %s22 = sphi 0, %s19
    %s23 = sphi 0, %s22
    %s39 = sphi 0, %s23
    %s43 = sphi 0, %s43
    %s45 = sphi 0, %s43
    %s46 = sphi 0, %s45
    %s60 = sphi 0, %s46
    %s64 = sphi 0, %s64
    %s66 = sphi 0, %s64
    %s67 = sphi 0, %s66
    %s81 = sphi 0, %s67
    %s87 = sphi 0, %s89
    %s90 = sphi 0, %s87
    %s91 = sphi 0, %s90
    %s107 = sphi 0, %s91
  $region4: #{gaussian_forward.1} parent=0 // loop_header_branch
    %12 = sbr.rel (%p10) target = $region8
  $region5: #{gaussian_forward.1} parent=0 // loop_body
    %s14 = ssub.s32 %s9, 1
    %s15 = ssub.s32 %s9, 2
    %s16 = sadd.s32 %s9, 1
    %s17 = ssub.s32 %s9, %s16
    %p18 = scmp.eq.s32.totalorder %s17, 0
    %s20 = sadd.s32 %s19, 1
    %s21 = scalar_select %p18, %s19, %s20
    %p24 = pneg %p18
    %p25 = scmp.eq.s32.totalorder %s9, 2
    %p26 = por %p24, %p25
    %p27 = scmp.ne.s32.totalorder %s19, %s22
    %p28 = scmp.eq.s32.totalorder %s9, 0
    %p29 = por %p27, %p28
    %p30 = scmp.ne.s32.totalorder %s19, %s22
    %p31 = scmp.eq.s32.totalorder %s14, 2
    %p32 = por %p30, %p31
    %p33 = scmp.ne.s32.totalorder %s22, %s23
    %p34 = scmp.eq.s32.totalorder %s14, 0
    %p35 = por %p33, %p34
    %p36 = scmp.ne.s32.totalorder %s22, %s23
    %p37 = scmp.eq.s32.totalorder %s15, 2
    %p38 = por %p36, %p37
    %p40 = scmp.ne.s32.totalorder %s23, %s39
    %p41 = scmp.eq.s32.totalorder %s15, 0
    %p42 = por %p40, %p41
    %s44 = sadd.s32 %s43, 1
    %p47 = scmp.eq.s32.totalorder %s9, 2
    %p48 = scmp.ne.s32.totalorder %s43, %s45
    %p49 = scmp.eq.s32.totalorder %s9, 0
    %p50 = por %p48, %p49
    %p51 = scmp.ne.s32.totalorder %s43, %s45
    %p52 = scmp.eq.s32.totalorder %s14, 2
    %p53 = por %p51, %p52
    %p54 = scmp.ne.s32.totalorder %s45, %s46
    %p55 = scmp.eq.s32.totalorder %s14, 0
    %p56 = por %p54, %p55
    %p57 = scmp.ne.s32.totalorder %s45, %s46
    %p58 = scmp.eq.s32.totalorder %s15, 2
    %p59 = por %p57, %p58
    %p61 = scmp.ne.s32.totalorder %s46, %s60
    %p62 = scmp.eq.s32.totalorder %s15, 0
    %p63 = por %p61, %p62
    %s65 = sadd.s32 %s64, 1
    %p68 = scmp.eq.s32.totalorder %s9, 2
    %p69 = scmp.ne.s32.totalorder %s64, %s66
    %p70 = scmp.eq.s32.totalorder %s9, 0
    %p71 = por %p69, %p70
    %p72 = scmp.ne.s32.totalorder %s64, %s66
    %p73 = scmp.eq.s32.totalorder %s14, 2
    %p74 = por %p72, %p73
    %p75 = scmp.ne.s32.totalorder %s66, %s67
    %p76 = scmp.eq.s32.totalorder %s14, 0
    %p77 = por %p75, %p76
    %p78 = scmp.ne.s32.totalorder %s66, %s67
    %p79 = scmp.eq.s32.totalorder %s15, 2
    %p80 = por %p78, %p79
    %p82 = scmp.ne.s32.totalorder %s67, %s81
    %p83 = scmp.eq.s32.totalorder %s15, 0
    %p84 = por %p82, %p83
    %s85 = ssub.s32 %s9, %s16
    %p86 = scmp.eq.s32.totalorder %s85, 0
    %s88 = sadd.s32 %s87, 1
    %s89 = scalar_select %p86, %s87, %s88
    %p92 = pneg %p86
    %p93 = scmp.eq.s32.totalorder %s9, 2
    %p94 = por %p92, %p93
    %p95 = scmp.ne.s32.totalorder %s87, %s90
    %p96 = scmp.eq.s32.totalorder %s9, 0
    %p97 = por %p95, %p96
    %p98 = scmp.ne.s32.totalorder %s87, %s90
    %p99 = scmp.eq.s32.totalorder %s14, 2
    %p100 = por %p98, %p99
    %p101 = scmp.ne.s32.totalorder %s90, %s91
    %p102 = scmp.eq.s32.totalorder %s14, 0
    %p103 = por %p101, %p102
    %p104 = scmp.ne.s32.totalorder %s90, %s91
    %p105 = scmp.eq.s32.totalorder %s15, 2
    %p106 = por %p104, %p105
    %p108 = scmp.ne.s32.totalorder %s91, %s107
    %p109 = scmp.eq.s32.totalorder %s15, 0
    %p110 = por %p108, %p109
    %p111 = scmp.le.s32.totalorder 1, %s9
    %p112 = scmp.lt.s32.totalorder %s9, 4
    %p113 = pnand %p111, %p112
    %p114 = pneg %p113
    // Predicated region
    $region9: #{gaussian_forward.1} parent=5 // pred_check
      _
    $region10: #{gaussian_forward.1} parent=5 // pred_check_branch
      %116 = sbr.rel (%p113) target = $region12
    $region11: #{gaussian_forward.1} parent=5 // pred_region
      %s117 = ssub.s32 %s9, 1
      // Predicated region
      $region13: #{gaussian_forward.1} parent=11 // pred_check
        %p118 = pneg %p56
      $region14: #{gaussian_forward.1} parent=11 // pred_check_branch
        %120 = sbr.rel (%p118) target = $region16
      $region15: #{gaussian_forward.1} parent=11 // pred_region
        _
      $region16: #{gaussian_forward.1} parent=11 // pred_fallthru
        _
      // Predicated region
      $region17: #{gaussian_forward.1} parent=11 // pred_check
        %p121 = pneg %p77
      $region18: #{gaussian_forward.1} parent=11 // pred_check_branch
        %123 = sbr.rel (%p121) target = $region20
      $region19: #{gaussian_forward.1} parent=11 // pred_region
        _
      $region20: #{gaussian_forward.1} parent=11 // pred_fallthru
        _
    $region12: #{gaussian_forward.1} parent=5 // pred_fallthru
      _
    %p124 = scmp.lt.s32.totalorder %s9, 3
    // Predicated region
    $region21: #{gaussian_forward.1} parent=5 // pred_check
      %p125 = pneg %p124
    $region22: #{gaussian_forward.1} parent=5 // pred_check_branch
      %127 = sbr.rel (%p125) target = $region24
    $region23: #{gaussian_forward.1} parent=5 // pred_region
      // Predicated region
      $region25: #{gaussian_forward.1} parent=23 // pred_check
        %p128 = pneg %p29
      $region26: #{gaussian_forward.1} parent=23 // pred_check_branch
        %130 = sbr.rel (%p128) target = $region28
      $region27: #{gaussian_forward.1} parent=23 // pred_region
        %p131 = scmp.lt.s32.totalorder %s9, 2
        %s132 = scalar_select %p131, %s9, 2
        %s133 = smul.addr %s132, 8
        %s134 = scalar_lea.vmem %s0, %s133
      $region28: #{gaussian_forward.1} parent=23 // pred_fallthru
        _
    $region24: #{gaussian_forward.1} parent=5 // pred_fallthru
      _
    %p135 = scmp.le.s32.totalorder 1, %s9
    %p136 = scmp.lt.s32.totalorder %s9, 4
    %p137 = pnand %p135, %p136
    %p138 = pneg %p137
    // Predicated region
    $region29: #{gaussian_forward.1} parent=5 // pred_check
      _
    $region30: #{gaussian_forward.1} parent=5 // pred_check_branch
      %140 = sbr.rel (%p137) target = $region32
    $region31: #{gaussian_forward.1} parent=5 // pred_region
      %s141 = ssub.s32 %s9, 1
      %p142 = scmp.lt.s32.totalorder %s14, 2
      %s143 = scalar_select %p142, %s14, 2
      %s144 = smul.addr %s143, 8
      %s145 = scalar_lea.vmem %s0, %s144
      %p146 = pneg %p35
      %p147 = pneg %p32
      %p148 = pneg %p56
      %p149 = pneg %p53
      %p150 = pneg %p77
      %p151 = pneg %p74
      %p152 = pneg %p103
      %p153 = pneg %p100
      %p154 = scmp.lt.s32.totalorder %s14, 2
      %s155 = scalar_select %p154, %s14, 2
      %s156 = smul.addr %s155, 8
      %s157 = scalar_lea.vmem %s3, %s156
      %p158 = scmp.lt.s32.totalorder %s14, 2
      %s159 = scalar_select %p158, %s14, 2
      %s160 = smul.addr %s159, 8
      %s161 = scalar_lea.vmem %s0, %s160
      %p162 = scmp.lt.s32.totalorder %s14, 2
      %s163 = scalar_select %p162, %s14, 2
      %s164 = smul.addr %s163, 8
      %s165 = scalar_lea.vmem %s3, %s164
      %v166 = vld [vmem:[%s161] sm:$0xff]
      %v167 = vld [vmem:[%s1] sm:$0xff]
      %v168 = vld [vmem:[%s1 + $0x8] sm:$0xff]
      %v169 = vld [vmem:[%s1 + $0x10] sm:$0xff]
      %v170 = vld [vmem:[%s1 + $0x18] sm:$0xff]
      %v171 = vld [vmem:[%s2] sm:$0x1]
      %v173 = vperm.slane %v171, 0
      %vm175 = vcmask 261120
      %v177 = vsel %vm175, %v166, 0
      %179 = vmatpush.msra.mxu0 0.0
      %180 = vmatpush.msra.mxu0 0.0
      %181 = vmatpush.msra.mxu0 0.0
      %182 = vmatpush.msra.mxu0 0.0
      %183 = vmatpush.msra.mxu0 0.0
      %184 = vmatpush.msra.mxu0 0.0
      %185 = vmatpush.msra.mxu0 0.0
      %186 = vmatpush.msra.mxu0 0.0
      %187 = vmatpush.msra.mxu0 0.0
      %188 = vmatpush.msra.mxu0 0.0
      %189 = vmatpush.msra.mxu0 0.0
      %190 = vmatpush.msra.mxu0 0.0
      %191 = vmatpush.msra.mxu0 %v170
      %192 = vmatpush.msra.mxu0 %v169
      %193 = vmatpush.msra.mxu0 %v168
      %194 = vmatpush.msra.mxu0 %v167
      %195 = vmatmul.f32.gmra.mxu0 %v177
      %v196 = vpop.f32.mrf.mxu0
      %v197 = vadd.f32 %v173, %v196
      %198 = vdwg.mxu0
      %v199 = vmax.f32 %v197, 0.0
      %v200 = vand.u32 2147483647, %v197
      %v201 = vsub.f32 0.0, %v200
      %v202 = vmul.f32 %v201, 1.442695
      %v203 = vpow.pop %v202
      %v204 = vadd.f32 %v203, 1.0
      %v205 = vlog2.pop %v204
      %v206 = vmul.f32 %v205, 0.6931472
      %v207 = vmul.f32 -0.5, %v203
      %v208 = vadd.f32 %v207, 1.0
      %v209 = vmul.f32 %v208, %v203
      %v210 = vand.u32 2147483647, %v203
      %vm211 = vcmp.lt.f32.partialorder %v210, 0.0004427343
      %v212 = vsel %vm211, %v209, %v206
      %v213 = vadd.f32 %v199, %v212
      %v214 = vadd.f32 %v213, 1e-06
      %v215 = vlaneseq
      %v216 = vand.u32 %v215, 127
      %vm217 = vcmp.ge.s32.totalorder %v216, 16
      %v218 = vsel %vm217, %v214, %v197
      %219 = vst.msk [vmem:[%s165] sm:$0xff] %vm175, %v218
      %p220 = scmp.lt.s32.totalorder %s14, 2
      %s221 = scalar_select %p220, %s14, 2
      %s222 = smul.addr %s221, 8
      %s223 = scalar_lea.vmem %s3, %s222
      // Predicated region
      $region33: #{gaussian_forward.1} parent=31 // pred_check
        %p224 = pneg %p100
      $region34: #{gaussian_forward.1} parent=31 // pred_check_branch
        %226 = sbr.rel (%p224) target = $region36
      $region35: #{gaussian_forward.1} parent=31 // pred_region
        _
      $region36: #{gaussian_forward.1} parent=31 // pred_fallthru
        _
    $region32: #{gaussian_forward.1} parent=5 // pred_fallthru
      _
    %p227 = scmp.le.s32.totalorder 2, %s9
    // Predicated region
    $region37: #{gaussian_forward.1} parent=5 // pred_check
      %p228 = pneg %p227
    $region38: #{gaussian_forward.1} parent=5 // pred_check_branch
      %230 = sbr.rel (%p228) target = $region40
    $region39: #{gaussian_forward.1} parent=5 // pred_region
      %s231 = ssub.s32 %s9, 2
      // Predicated region
      $region41: #{gaussian_forward.1} parent=39 // pred_check
        %p232 = pneg %p106
      $region42: #{gaussian_forward.1} parent=39 // pred_check_branch
        %234 = sbr.rel (%p232) target = $region44
      $region43: #{gaussian_forward.1} parent=39 // pred_region
        %p235 = scmp.lt.s32.totalorder %s15, 2
        %s236 = scalar_select %p235, %s15, 2
        %s237 = smul.addr %s236, 8
        %s238 = scalar_lea.vmem %s3, %s237
      $region44: #{gaussian_forward.1} parent=39 // pred_fallthru
        _
    $region40: #{gaussian_forward.1} parent=5 // pred_fallthru
      _
  $region6: #{gaussian_forward.1} parent=0 // loop_footer
    %s13 = sadd.s32 1, %s9
  $region7: #{gaussian_forward.1} parent=0 // loop_footer_branch
    %8 = sbr.rel target = $region3
  $region8: #{gaussian_forward.1} parent=0 // loop_exit
    _

</llo_original>
